<compile_context>
chip_gen: v7x
topology: tpu7x:2x2x1
jax: 0.10.0
libtpu: 0.0.40
codegen_flags: <defaults>
</compile_context>

<pallas_src>
import functools

import jax
import jax.numpy as jnp
from jax.experimental import pallas as pl
from jax.experimental.pallas import tpu as pltpu


# ---------------------------------------------------------------------------
# Pallas kernel
# ---------------------------------------------------------------------------
def _make_kernel(blocks: int, tg: int, s: int, compute_dtype):
    """Kernel over one tile of TG groups, flattened to [TG*s, d] rows."""

    def kernel(x_ref, *refs):
        # refs = (wt, bt, [w1, b1, w2, b2] * blocks, out_ref)
        out_ref = refs[-1]
        params = refs[:-1]

        x = x_ref[...]                      # [TG*s, d] float32

        # transfer: pointwise conv (BN scale pre-folded into weights) + ReLU
        wt, bt = params[0], params[1]
        h = jnp.dot(x.astype(compute_dtype), wt[...],
                    preferred_element_type=jnp.float32) + bt[...]
        h = jnp.maximum(h, 0.0)             # [TG*s, C] f32

        idx = 2
        for _ in range(blocks):
            w1, b1, w2, b2 = params[idx:idx + 4]
            idx += 4
            h1 = jnp.dot(h.astype(compute_dtype), w1[...],
                         preferred_element_type=jnp.float32) + b1[...]
            h1 = jnp.maximum(h1, 0.0)
            h2 = jnp.dot(h1.astype(compute_dtype), w2[...],
                         preferred_element_type=jnp.float32) + b2[...]
            h = jnp.maximum(h2 + h, 0.0)

        # adaptive_max_pool1d(., 1): max over the sequence axis.
        # Reshape only splits the leading (sublane) dim — C stays in lanes.
        c = h.shape[-1]
        out_ref[...] = jnp.max(h.reshape(tg, s, c), axis=1)   # [TG, C]

    return kernel


def pre_extraction_pallas(x_bnsd, params, blocks, *,
                          rows_per_tile=128, use_bf16=False):
    """x_bnsd: [b, n, s, d] float32.  Returns [b, C, n] float32."""
    b, n, s, d = x_bnsd.shape
    c = params["wt"].shape[1]
    bn = b * n

    # Groups per grid step: target ~rows_per_tile flattened rows per matmul
    # (128 is the natural MXU M-tile on v5e; bump to 256 for v6e/v7x).
    tg = max(1, min(bn, max(1, rows_per_tile // s)))
    bn_pad = -(-bn // tg) * tg

    compute_dtype = jnp.bfloat16 if use_bf16 else jnp.float32

    # [b, n, s, d] -> [bn_pad*s, d]  (channels-last; equivalent to the
    # PyTorch permute(0,1,3,2).reshape(-1, d, s) for k=1 convs).
    x = x_bnsd.reshape(bn, s, d)
    if bn_pad != bn:
        x = jnp.pad(x, ((0, bn_pad - bn), (0, 0), (0, 0)))
    x = x.reshape(bn_pad * s, d)

    # BN scale already folded into weights; only per-channel shifts remain.
    flat_params = [params["wt"].astype(compute_dtype), params["bt"]]
    for blk in params["blocks"]:
        flat_params += [blk["w1"].astype(compute_dtype), blk["b1"],
                        blk["w2"].astype(compute_dtype), blk["b2"]]

    def full_spec(arr):
        nd = arr.ndim
        return pl.BlockSpec(arr.shape, lambda i, _nd=nd: (0,) * _nd)

    in_specs = [pl.BlockSpec((tg * s, d), lambda i: (i, 0))]
    in_specs += [full_spec(a) for a in flat_params]

    out = pl.pallas_call(
        _make_kernel(blocks, tg, s, compute_dtype),
        out_shape=jax.ShapeDtypeStruct((bn_pad, c), jnp.float32),
        grid_spec=pltpu.PrefetchScalarGridSpec(
            num_scalar_prefetch=0,
            grid=(bn_pad // tg,),
            in_specs=in_specs,
            out_specs=pl.BlockSpec((tg, c), lambda i: (i, 0)),
        ),
        compiler_params=pltpu.CompilerParams(
            dimension_semantics=("parallel",)),
    )(x, *flat_params)

    # [bn, C] -> [b, n, C] -> [b, C, n]
    pooled = out[:bn]
    return jnp.transpose(pooled.reshape(b, n, c), (0, 2, 1))


# ---------------------------------------------------------------------------
# Deterministic parameter construction: Conv1d(k=1) weights + fresh eval-mode
# BatchNorm (running_mean=0, running_var=1), with the BN scale folded into the
# weight columns and the shift kept per-channel.
# ---------------------------------------------------------------------------
def _fold_bn_into_conv(w, conv_bias, gamma, beta, eps=1e-5):
    # NOTE: assumes fresh eval-mode BN stats (mean=0, var=1); with a trained
    # checkpoint, fold the real running stats here instead.
    scale = gamma / jnp.sqrt(1.0 + eps)
    w_f = w * scale[None, :]
    b_f = (conv_bias * scale + beta)[None, :]
    return w_f, b_f


def make_params(key, in_channels, out_channels, blocks):
    keys = jax.random.split(key, 3 + 6 * blocks)
    k = iter(keys)

    def conv_w(kk, cin, cout):
        return 0.1 * jax.random.normal(kk, (cin, cout), jnp.float32)

    wt_raw = conv_w(next(k), in_channels, out_channels)
    bt_conv = 0.05 * jax.random.normal(next(k), (out_channels,), jnp.float32)
    gamma_t = 1.0 + 0.1 * jax.random.normal(next(k), (out_channels,), jnp.float32)
    beta_t = jnp.zeros((out_channels,), jnp.float32)
    wt, bt = _fold_bn_into_conv(wt_raw, bt_conv, gamma_t, beta_t)

    blks = []
    for _ in range(blocks):
        w1_raw = conv_w(next(k), out_channels, out_channels)
        b1c = 0.05 * jax.random.normal(next(k), (out_channels,), jnp.float32)
        g1 = 1.0 + 0.1 * jax.random.normal(next(k), (out_channels,), jnp.float32)
        w1, b1 = _fold_bn_into_conv(w1_raw, b1c, g1,
                                    jnp.zeros((out_channels,), jnp.float32))

        w2_raw = conv_w(next(k), out_channels, out_channels)
        b2c = 0.05 * jax.random.normal(next(k), (out_channels,), jnp.float32)
        g2 = 1.0 + 0.1 * jax.random.normal(next(k), (out_channels,), jnp.float32)
        w2, b2 = _fold_bn_into_conv(w2_raw, b2c, g2,
                                    jnp.zeros((out_channels,), jnp.float32))

        blks.append(dict(w1=w1, b1=b1, w2=w2, b2=b2))

    return dict(wt=wt, bt=bt, blocks=blks)


# ---------------------------------------------------------------------------
# Pure-JAX reference (same math, folded params) for a correctness check.
# ---------------------------------------------------------------------------
def pre_extraction_ref(x_bnsd, params):
    b, n, s, d = x_bnsd.shape
    x = x_bnsd.reshape(b * n, s, d)
    h = jnp.maximum(jnp.einsum("gsd,dc->gsc", x, params["wt"])
                    + params["bt"], 0.0)
    for blk in params["blocks"]:
        h1 = jnp.maximum(jnp.einsum("gsc,ce->gse", h, blk["w1"]) + blk["b1"], 0.0)
        h2 = jnp.einsum("gse,ec->gsc", h1, blk["w2"]) + blk["b2"]
        h = jnp.maximum(h2 + h, 0.0)
    pooled = jnp.max(h, axis=1)  # [b*n, C]
    c = pooled.shape[-1]
    return jnp.transpose(pooled.reshape(b, n, c), (0, 2, 1))


# ---------------------------------------------------------------------------
if __name__ == "__main__":
    # Module config: channels=4 -> in_channels = 3 + 2*4 = 11 (use_xyz=True)
    channels = 4
    in_channels = 3 + 2 * channels
    out_channels = 32
    blocks = 1

    b, n, s = 2, 8, 16   # x: [b, g(n), k(s), d]

    key = jax.random.PRNGKey(0)
    kx, kp = jax.random.split(key)
    x = jax.random.normal(kx, (b, n, s, in_channels), jnp.float32)
    params = make_params(kp, in_channels, out_channels, blocks)

    ref = pre_extraction_ref(x, params)

    # f32 MXU path (v5e-friendly, strict accuracy).
    run_f32 = jax.jit(functools.partial(
        pre_extraction_pallas, blocks=blocks, use_bf16=False))
    out_f32 = jax.block_until_ready(run_f32(x, params))
    assert out_f32.shape == (b, out_channels, n), out_f32.shape
    assert jnp.allclose(out_f32, ref, atol=1e-4, rtol=1e-4), \
        float(jnp.max(jnp.abs(out_f32 - ref)))

    # bf16 MXU path (v6e/v7x mixed precision; f32 accumulate + f32 elementwise).
    run_bf16 = jax.jit(functools.partial(
        pre_extraction_pallas, blocks=blocks, use_bf16=True))
    out_bf16 = jax.block_until_ready(run_bf16(x, params))
    assert out_bf16.shape == (b, out_channels, n), out_bf16.shape
    assert jnp.allclose(out_bf16, ref, atol=3e-2, rtol=3e-2), \
        float(jnp.max(jnp.abs(out_bf16 - ref)))

    print("KERNEL_OK")
</pallas_src>

<mosaic_0001>
module attributes {stable_mosaic.version = 11 : i64} {
  func.func @kernel(%arg0: i32, %arg1: memref<128x11xf32, #tpu.memory_space<vmem>>, %arg2: memref<11x32xf32, #tpu.memory_space<vmem>>, %arg3: memref<1x32xf32, #tpu.memory_space<vmem>>, %arg4: memref<32x32xf32, #tpu.memory_space<vmem>>, %arg5: memref<1x32xf32, #tpu.memory_space<vmem>>, %arg6: memref<32x32xf32, #tpu.memory_space<vmem>>, %arg7: memref<1x32xf32, #tpu.memory_space<vmem>>, %arg8: memref<8x32xf32, #tpu.memory_space<vmem>>) attributes {dimension_semantics = [#tpu.dimension_semantics<parallel>], iteration_bounds = array<i64: 2>, scalar_prefetch = 0 : i64, scratch_operands = 0 : i64, tpu.core_type = #tpu.core_type<tc>, window_params = [{transform_indices = @transform_0, window_bounds = array<i64: 128, 11>}, {pipeline_mode = #tpu.pipeline_mode<synchronous>, transform_indices = @transform_1, window_bounds = array<i64: 11, 32>}, {pipeline_mode = #tpu.pipeline_mode<synchronous>, transform_indices = @transform_2, window_bounds = array<i64: 1, 32>}, {pipeline_mode = #tpu.pipeline_mode<synchronous>, transform_indices = @transform_3, window_bounds = array<i64: 32, 32>}, {pipeline_mode = #tpu.pipeline_mode<synchronous>, transform_indices = @transform_4, window_bounds = array<i64: 1, 32>}, {pipeline_mode = #tpu.pipeline_mode<synchronous>, transform_indices = @transform_5, window_bounds = array<i64: 32, 32>}, {pipeline_mode = #tpu.pipeline_mode<synchronous>, transform_indices = @transform_6, window_bounds = array<i64: 1, 32>}, {transform_indices = @transform_7, window_bounds = array<i64: 8, 32>}]} {
    %c0 = arith.constant 0 : index
    %c0_0 = arith.constant 0 : index
    %0 = vector.load %arg1[%c0, %c0_0] : memref<128x11xf32, #tpu.memory_space<vmem>>, vector<128x11xf32>
    %c0_1 = arith.constant 0 : index
    %c0_2 = arith.constant 0 : index
    %1 = vector.load %arg2[%c0_1, %c0_2] : memref<11x32xf32, #tpu.memory_space<vmem>>, vector<11x32xf32>
    %cst = arith.constant dense<0.000000e+00> : vector<128x32xf32>
    %2 = tpu.matmul %0, %1, %cst {dimension_numbers = #tpu.dot_dimension_numbers<[1], [0], [0], [1], [0, 0, 1, 1], [], []>} : vector<128x11xf32>, vector<11x32xf32>, vector<128x32xf32> -> vector<128x32xf32>
    %c0_3 = arith.constant 0 : index
    %c0_4 = arith.constant 0 : index
    %3 = vector.load %arg3[%c0_3, %c0_4] : memref<1x32xf32, #tpu.memory_space<vmem>>, vector<1x32xf32>
    %4 = vector.broadcast %3 : vector<1x32xf32> to vector<128x32xf32>
    %5 = arith.addf %2, %4 : vector<128x32xf32>
    %cst_5 = arith.constant 0.000000e+00 : f32
    %6 = vector.broadcast %cst_5 : f32 to vector<128x32xf32>
    %7 = arith.maximumf %5, %6 : vector<128x32xf32>
    %c0_6 = arith.constant 0 : index
    %c0_7 = arith.constant 0 : index
    %8 = vector.load %arg4[%c0_6, %c0_7] : memref<32x32xf32, #tpu.memory_space<vmem>>, vector<32x32xf32>
    %cst_8 = arith.constant dense<0.000000e+00> : vector<128x32xf32>
    %9 = tpu.matmul %7, %8, %cst_8 {dimension_numbers = #tpu.dot_dimension_numbers<[1], [0], [0], [1], [0, 0, 1, 1], [], []>} : vector<128x32xf32>, vector<32x32xf32>, vector<128x32xf32> -> vector<128x32xf32>
    %c0_9 = arith.constant 0 : index
    %c0_10 = arith.constant 0 : index
    %10 = vector.load %arg5[%c0_9, %c0_10] : memref<1x32xf32, #tpu.memory_space<vmem>>, vector<1x32xf32>
    %11 = vector.broadcast %10 : vector<1x32xf32> to vector<128x32xf32>
    %12 = arith.addf %9, %11 : vector<128x32xf32>
    %cst_11 = arith.constant 0.000000e+00 : f32
    %13 = vector.broadcast %cst_11 : f32 to vector<128x32xf32>
    %14 = arith.maximumf %12, %13 : vector<128x32xf32>
    %c0_12 = arith.constant 0 : index
    %c0_13 = arith.constant 0 : index
    %15 = vector.load %arg6[%c0_12, %c0_13] : memref<32x32xf32, #tpu.memory_space<vmem>>, vector<32x32xf32>
    %cst_14 = arith.constant dense<0.000000e+00> : vector<128x32xf32>
    %16 = tpu.matmul %14, %15, %cst_14 {dimension_numbers = #tpu.dot_dimension_numbers<[1], [0], [0], [1], [0, 0, 1, 1], [], []>} : vector<128x32xf32>, vector<32x32xf32>, vector<128x32xf32> -> vector<128x32xf32>
    %c0_15 = arith.constant 0 : index
    %c0_16 = arith.constant 0 : index
    %17 = vector.load %arg7[%c0_15, %c0_16] : memref<1x32xf32, #tpu.memory_space<vmem>>, vector<1x32xf32>
    %18 = vector.broadcast %17 : vector<1x32xf32> to vector<128x32xf32>
    %19 = arith.addf %16, %18 : vector<128x32xf32>
    %20 = arith.addf %19, %7 : vector<128x32xf32>
    %cst_17 = arith.constant 0.000000e+00 : f32
    %21 = vector.broadcast %cst_17 : f32 to vector<128x32xf32>
    %22 = arith.maximumf %20, %21 : vector<128x32xf32>
    %23 = vector.shape_cast %22 : vector<128x32xf32> to vector<8x16x32xf32>
    %cst_18 = arith.constant dense<0xFF800000> : vector<8x32xf32>
    %24 = vector.multi_reduction <maximumf>, %23, %cst_18 [1] : vector<8x16x32xf32> to vector<8x32xf32>
    %c0_19 = arith.constant 0 : index
    %c0_20 = arith.constant 0 : index
    %25 = vector.load %arg8[%c0_19, %c0_20] : memref<8x32xf32, #tpu.memory_space<vmem>>, vector<8x32xf32>
    tpu.vector_store %arg8[%c0_19, %c0_20], %24 {strides = array<i32>} : memref<8x32xf32, #tpu.memory_space<vmem>>, vector<8x32xf32>,
    return
  }
  func.func @transform_0(%arg0: i32) -> (i32, i32) {
    %c0_i32 = arith.constant 0 : i32
    %c0_i32_0 = arith.constant 0 : i32
    return %arg0, %c0_i32 : i32, i32
  }
  func.func @transform_1(%arg0: i32) -> (i32, i32) {
    %c0_i32 = arith.constant 0 : i32
    %c0_i32_0 = arith.constant 0 : i32
    %c0_i32_1 = arith.constant 0 : i32
    return %c0_i32, %c0_i32_0 : i32, i32
  }
  func.func @transform_2(%arg0: i32) -> (i32, i32) {
    %c0_i32 = arith.constant 0 : i32
    %c0_i32_0 = arith.constant 0 : i32
    %c0_i32_1 = arith.constant 0 : i32
    return %c0_i32, %c0_i32_0 : i32, i32
  }
  func.func @transform_3(%arg0: i32) -> (i32, i32) {
    %c0_i32 = arith.constant 0 : i32
    %c0_i32_0 = arith.constant 0 : i32
    %c0_i32_1 = arith.constant 0 : i32
    return %c0_i32, %c0_i32_0 : i32, i32
  }
  func.func @transform_4(%arg0: i32) -> (i32, i32) {
    %c0_i32 = arith.constant 0 : i32
    %c0_i32_0 = arith.constant 0 : i32
    %c0_i32_1 = arith.constant 0 : i32
    return %c0_i32, %c0_i32_0 : i32, i32
  }
  func.func @transform_5(%arg0: i32) -> (i32, i32) {
    %c0_i32 = arith.constant 0 : i32
    %c0_i32_0 = arith.constant 0 : i32
    %c0_i32_1 = arith.constant 0 : i32
    return %c0_i32, %c0_i32_0 : i32, i32
  }
  func.func @transform_6(%arg0: i32) -> (i32, i32) {
    %c0_i32 = arith.constant 0 : i32
    %c0_i32_0 = arith.constant 0 : i32
    %c0_i32_1 = arith.constant 0 : i32
    return %c0_i32, %c0_i32_0 : i32, i32
  }
  func.func @transform_7(%arg0: i32) -> (i32, i32) {
    %c0_i32 = arith.constant 0 : i32
    %c0_i32_0 = arith.constant 0 : i32
    return %arg0, %c0_i32 : i32, i32
  }
}

</mosaic_0001>

<llo_original>
// kernel: pre_extraction_pallas.1
$region0: #{pre_extraction_pallas.1}
  #allocation0 [shape = 'u32[]', space=smem, size = 0x4, offset = 0x4, fixed_abs, tag = 'smem constant byte address 0x4 - core index']
  #allocation1 [shape = 'u32[144,128]{1,0:T(1,128)}', space=vmem, size = 0x12000, scoped, tag = 'internal scratch']
  %s0 = inlined_call_operand.vmem [shape: f32[256,11], index: 0, kind: input, shape index: {}]
  %s1 = inlined_call_operand.vmem [shape: f32[11,32], index: 1, kind: input, shape index: {}]
  %s2 = inlined_call_operand.vmem [shape: f32[1,32], index: 2, kind: input, shape index: {}]
  %s3 = inlined_call_operand.vmem [shape: f32[32,32], index: 3, kind: input, shape index: {}]
  %s4 = inlined_call_operand.vmem [shape: f32[1,32], index: 4, kind: input, shape index: {}]
  %s5 = inlined_call_operand.vmem [shape: f32[32,32], index: 5, kind: input, shape index: {}]
  %s6 = inlined_call_operand.vmem [shape: f32[1,32], index: 6, kind: input, shape index: {}]
  %s7 = inlined_call_operand.hbm [shape: f32[16,32], index: 7, kind: output, shape index: {}]
  %s8 = sld [smem:[#allocation0]]
  $region61: #{pre_extraction_pallas.1} parent=0
    _
  %s10 = ssub.s32 1, %s8
  %s11 = scalar_select 0, %s10, %s8
  $region1: #{pre_extraction_pallas.1} parent=0
    #allocation2 [shape = 'u8[8192]{0}', space=vmem, size = 0x2000, scoped, tag = 'output window, operand 0']
    #allocation3 [shape = 's32[2]{0}', space=sflag, size = 0x8, scoped, tag = 'scoped memory for pre_extraction_pallas.1']
    %12 = vsyncpa [#allocation3], 0
    %s13 = scalar_lea.sflag [#allocation3], 1
    %14 = vsyncpa %s13, 0
    loop: start=0, step=1, limit=4
    $region2: #{pre_extraction_pallas.1} parent=1 // loop_pre_header
      _
    $region3: #{pre_extraction_pallas.1} parent=1 // loop_header
      %s16 = sphi 0, %s20
      %p17 = scmp.ge.s32.totalorder %s16, 4
      %s26 = sphi 0, %s28
      %s29 = sphi 0, %s26
      %s30 = sphi 0, %s29
      %s46 = sphi 0, %s30
      %s50 = sphi 0, %s50
      %s52 = sphi 0, %s50
      %s53 = sphi 0, %s52
      %s67 = sphi 0, %s53
      %s71 = sphi 0, %s71
      %s73 = sphi 0, %s71
      %s74 = sphi 0, %s73
      %s88 = sphi 0, %s74
      %s92 = sphi 0, %s92
      %s94 = sphi 0, %s92
      %s95 = sphi 0, %s94
      %s109 = sphi 0, %s95
      %s113 = sphi 0, %s113
      %s115 = sphi 0, %s113
      %s116 = sphi 0, %s115
      %s130 = sphi 0, %s116
      %s134 = sphi 0, %s134
      %s136 = sphi 0, %s134
      %s137 = sphi 0, %s136
      %s151 = sphi 0, %s137
      %s155 = sphi 0, %s155
      %s157 = sphi 0, %s155
      %s158 = sphi 0, %s157
      %s172 = sphi 0, %s158
      %s178 = sphi 0, %s180
      %s181 = sphi 0, %s178
      %s182 = sphi 0, %s181
      %s198 = sphi 0, %s182
    $region4: #{pre_extraction_pallas.1} parent=1 // loop_header_branch
      %19 = sbr.rel (%p17) target = $region8
    $region5: #{pre_extraction_pallas.1} parent=1 // loop_body
      %s21 = ssub.s32 %s16, 1
      %s22 = ssub.s32 %s16, 2
      %s23 = sadd.s32 %s16, 1
      %s24 = ssub.s32 %s16, %s23
      %p25 = scmp.eq.s32.totalorder %s24, 0
      %s27 = sadd.s32 %s26, 1
      %s28 = scalar_select %p25, %s26, %s27
      %p31 = pneg %p25
      %p32 = scmp.eq.s32.totalorder %s16, 1
      %p33 = por %p31, %p32
      %p34 = scmp.ne.s32.totalorder %s26, %s29
      %p35 = scmp.eq.s32.totalorder %s16, 0
      %p36 = por %p34, %p35
      %p37 = scmp.ne.s32.totalorder %s26, %s29
      %p38 = scmp.eq.s32.totalorder %s21, 1
      %p39 = por %p37, %p38
      %p40 = scmp.ne.s32.totalorder %s29, %s30
      %p41 = scmp.eq.s32.totalorder %s21, 0
      %p42 = por %p40, %p41
      %p43 = scmp.ne.s32.totalorder %s29, %s30
      %p44 = scmp.eq.s32.totalorder %s22, 1
      %p45 = por %p43, %p44
      %p47 = scmp.ne.s32.totalorder %s30, %s46
      %p48 = scmp.eq.s32.totalorder %s22, 0
      %p49 = por %p47, %p48
      %s51 = sadd.s32 %s50, 1
      %p54 = scmp.eq.s32.totalorder %s16, 1
      %p55 = scmp.ne.s32.totalorder %s50, %s52
      %p56 = scmp.eq.s32.totalorder %s16, 0
      %p57 = por %p55, %p56
      %p58 = scmp.ne.s32.totalorder %s50, %s52
      %p59 = scmp.eq.s32.totalorder %s21, 1
      %p60 = por %p58, %p59
      %p61 = scmp.ne.s32.totalorder %s52, %s53
      %p62 = scmp.eq.s32.totalorder %s21, 0
      %p63 = por %p61, %p62
      %p64 = scmp.ne.s32.totalorder %s52, %s53
      %p65 = scmp.eq.s32.totalorder %s22, 1
      %p66 = por %p64, %p65
      %p68 = scmp.ne.s32.totalorder %s53, %s67
      %p69 = scmp.eq.s32.totalorder %s22, 0
      %p70 = por %p68, %p69
      %s72 = sadd.s32 %s71, 1
      %p75 = scmp.eq.s32.totalorder %s16, 1
      %p76 = scmp.ne.s32.totalorder %s71, %s73
      %p77 = scmp.eq.s32.totalorder %s16, 0
      %p78 = por %p76, %p77
      %p79 = scmp.ne.s32.totalorder %s71, %s73
      %p80 = scmp.eq.s32.totalorder %s21, 1
      %p81 = por %p79, %p80
      %p82 = scmp.ne.s32.totalorder %s73, %s74
      %p83 = scmp.eq.s32.totalorder %s21, 0
      %p84 = por %p82, %p83
      %p85 = scmp.ne.s32.totalorder %s73, %s74
      %p86 = scmp.eq.s32.totalorder %s22, 1
      %p87 = por %p85, %p86
      %p89 = scmp.ne.s32.totalorder %s74, %s88
      %p90 = scmp.eq.s32.totalorder %s22, 0
      %p91 = por %p89, %p90
      %s93 = sadd.s32 %s92, 1
      %p96 = scmp.eq.s32.totalorder %s16, 1
      %p97 = scmp.ne.s32.totalorder %s92, %s94
      %p98 = scmp.eq.s32.totalorder %s16, 0
      %p99 = por %p97, %p98
      %p100 = scmp.ne.s32.totalorder %s92, %s94
      %p101 = scmp.eq.s32.totalorder %s21, 1
      %p102 = por %p100, %p101
      %p103 = scmp.ne.s32.totalorder %s94, %s95
      %p104 = scmp.eq.s32.totalorder %s21, 0
      %p105 = por %p103, %p104
      %p106 = scmp.ne.s32.totalorder %s94, %s95
      %p107 = scmp.eq.s32.totalorder %s22, 1
      %p108 = por %p106, %p107
      %p110 = scmp.ne.s32.totalorder %s95, %s109
      %p111 = scmp.eq.s32.totalorder %s22, 0
      %p112 = por %p110, %p111
      %s114 = sadd.s32 %s113, 1
      %p117 = scmp.eq.s32.totalorder %s16, 1
      %p118 = scmp.ne.s32.totalorder %s113, %s115
      %p119 = scmp.eq.s32.totalorder %s16, 0
      %p120 = por %p118, %p119
      %p121 = scmp.ne.s32.totalorder %s113, %s115
      %p122 = scmp.eq.s32.totalorder %s21, 1
      %p123 = por %p121, %p122
      %p124 = scmp.ne.s32.totalorder %s115, %s116
      %p125 = scmp.eq.s32.totalorder %s21, 0
      %p126 = por %p124, %p125
      %p127 = scmp.ne.s32.totalorder %s115, %s116
      %p128 = scmp.eq.s32.totalorder %s22, 1
      %p129 = por %p127, %p128
      %p131 = scmp.ne.s32.totalorder %s116, %s130
      %p132 = scmp.eq.s32.totalorder %s22, 0
      %p133 = por %p131, %p132
      %s135 = sadd.s32 %s134, 1
      %p138 = scmp.eq.s32.totalorder %s16, 1
      %p139 = scmp.ne.s32.totalorder %s134, %s136
      %p140 = scmp.eq.s32.totalorder %s16, 0
      %p141 = por %p139, %p140
      %p142 = scmp.ne.s32.totalorder %s134, %s136
      %p143 = scmp.eq.s32.totalorder %s21, 1
      %p144 = por %p142, %p143
      %p145 = scmp.ne.s32.totalorder %s136, %s137
      %p146 = scmp.eq.s32.totalorder %s21, 0
      %p147 = por %p145, %p146
      %p148 = scmp.ne.s32.totalorder %s136, %s137
      %p149 = scmp.eq.s32.totalorder %s22, 1
      %p150 = por %p148, %p149
      %p152 = scmp.ne.s32.totalorder %s137, %s151
      %p153 = scmp.eq.s32.totalorder %s22, 0
      %p154 = por %p152, %p153
      %s156 = sadd.s32 %s155, 1
      %p159 = scmp.eq.s32.totalorder %s16, 1
      %p160 = scmp.ne.s32.totalorder %s155, %s157
      %p161 = scmp.eq.s32.totalorder %s16, 0
      %p162 = por %p160, %p161
      %p163 = scmp.ne.s32.totalorder %s155, %s157
      %p164 = scmp.eq.s32.totalorder %s21, 1
      %p165 = por %p163, %p164
      %p166 = scmp.ne.s32.totalorder %s157, %s158
      %p167 = scmp.eq.s32.totalorder %s21, 0
      %p168 = por %p166, %p167
      %p169 = scmp.ne.s32.totalorder %s157, %s158
      %p170 = scmp.eq.s32.totalorder %s22, 1
      %p171 = por %p169, %p170
      %p173 = scmp.ne.s32.totalorder %s158, %s172
      %p174 = scmp.eq.s32.totalorder %s22, 0
      %p175 = por %p173, %p174
      %s176 = ssub.s32 %s16, %s23
      %p177 = scmp.eq.s32.totalorder %s176, 0
      %s179 = sadd.s32 %s178, 1
      %s180 = scalar_select %p177, %s178, %s179
      %p183 = pneg %p177
      %p184 = scmp.eq.s32.totalorder %s16, 1
      %p185 = por %p183, %p184
      %p186 = scmp.ne.s32.totalorder %s178, %s181
      %p187 = scmp.eq.s32.totalorder %s16, 0
      %p188 = por %p186, %p187
      %p189 = scmp.ne.s32.totalorder %s178, %s181
      %p190 = scmp.eq.s32.totalorder %s21, 1
      %p191 = por %p189, %p190
      %p192 = scmp.ne.s32.totalorder %s181, %s182
      %p193 = scmp.eq.s32.totalorder %s21, 0
      %p194 = por %p192, %p193
      %p195 = scmp.ne.s32.totalorder %s181, %s182
      %p196 = scmp.eq.s32.totalorder %s22, 1
      %p197 = por %p195, %p196
      %p199 = scmp.ne.s32.totalorder %s182, %s198
      %p200 = scmp.eq.s32.totalorder %s22, 0
      %p201 = por %p199, %p200
      %p202 = scmp.le.s32.totalorder 1, %s16
      %p203 = scmp.lt.s32.totalorder %s16, 3
      %p204 = pnand %p202, %p203
      %p205 = pneg %p204
      // Predicated region
      $region9: #{pre_extraction_pallas.1} parent=5 // pred_check
        _
      $region10: #{pre_extraction_pallas.1} parent=5 // pred_check_branch
        %207 = sbr.rel (%p204) target = $region12
      $region11: #{pre_extraction_pallas.1} parent=5 // pred_region
        %s208 = ssub.s32 %s16, 1
        // Predicated region
        $region13: #{pre_extraction_pallas.1} parent=11 // pred_check
          %p209 = pneg %p63
        $region14: #{pre_extraction_pallas.1} parent=11 // pred_check_branch
          %211 = sbr.rel (%p209) target = $region16
        $region15: #{pre_extraction_pallas.1} parent=11 // pred_region
          _
        $region16: #{pre_extraction_pallas.1} parent=11 // pred_fallthru
          _
        // Predicated region
        $region17: #{pre_extraction_pallas.1} parent=11 // pred_check
          %p212 = pneg %p84
        $region18: #{pre_extraction_pallas.1} parent=11 // pred_check_branch
          %214 = sbr.rel (%p212) target = $region20
        $region19: #{pre_extraction_pallas.1} parent=11 // pred_region
          _
        $region20: #{pre_extraction_pallas.1} parent=11 // pred_fallthru
          _
        // Predicated region
        $region21: #{pre_extraction_pallas.1} parent=11 // pred_check
          %p215 = pneg %p105
        $region22: #{pre_extraction_pallas.1} parent=11 // pred_check_branch
          %217 = sbr.rel (%p215) target = $region24
        $region23: #{pre_extraction_pallas.1} parent=11 // pred_region
          _
        $region24: #{pre_extraction_pallas.1} parent=11 // pred_fallthru
          _
        // Predicated region
        $region25: #{pre_extraction_pallas.1} parent=11 // pred_check
          %p218 = pneg %p126
        $region26: #{pre_extraction_pallas.1} parent=11 // pred_check_branch
          %220 = sbr.rel (%p218) target = $region28
        $region27: #{pre_extraction_pallas.1} parent=11 // pred_region
          _
        $region28: #{pre_extraction_pallas.1} parent=11 // pred_fallthru
          _
        // Predicated region
        $region29: #{pre_extraction_pallas.1} parent=11 // pred_check
          %p221 = pneg %p147
        $region30: #{pre_extraction_pallas.1} parent=11 // pred_check_branch
          %223 = sbr.rel (%p221) target = $region32
        $region31: #{pre_extraction_pallas.1} parent=11 // pred_region
          _
        $region32: #{pre_extraction_pallas.1} parent=11 // pred_fallthru
          _
        // Predicated region
        $region33: #{pre_extraction_pallas.1} parent=11 // pred_check
          %p224 = pneg %p168
        $region34: #{pre_extraction_pallas.1} parent=11 // pred_check_branch
          %226 = sbr.rel (%p224) target = $region36
        $region35: #{pre_extraction_pallas.1} parent=11 // pred_region
          _
        $region36: #{pre_extraction_pallas.1} parent=11 // pred_fallthru
          _
      $region12: #{pre_extraction_pallas.1} parent=5 // pred_fallthru
        _
      %p227 = scmp.lt.s32.totalorder %s16, 2
      // Predicated region
      $region37: #{pre_extraction_pallas.1} parent=5 // pred_check
        %p228 = pneg %p227
      $region38: #{pre_extraction_pallas.1} parent=5 // pred_check_branch
        %230 = sbr.rel (%p228) target = $region40
      $region39: #{pre_extraction_pallas.1} parent=5 // pred_region
        // Predicated region
        $region41: #{pre_extraction_pallas.1} parent=39 // pred_check
          %p231 = pneg %p36
        $region42: #{pre_extraction_pallas.1} parent=39 // pred_check_branch
          %233 = sbr.rel (%p231) target = $region44
        $region43: #{pre_extraction_pallas.1} parent=39 // pred_region
          %s234 = smul.u32 16, %s16
          %p235 = scmp.lt.s32.totalorder %s234, 31
          %s236 = scalar_select %p235, %s234, 31
          %s237 = smul.addr %s236, 8
          %s238 = scalar_lea.vmem %s0, %s237
          %s239 = smul.u32 16, %s16
        $region44: #{pre_extraction_pallas.1} parent=39 // pred_fallthru
          _
      $region40: #{pre_extraction_pallas.1} parent=5 // pred_fallthru
        _
      %p240 = scmp.le.s32.totalorder 1, %s16
      %p241 = scmp.lt.s32.totalorder %s16, 3
      %p242 = pnand %p240, %p241
      %p243 = pneg %p242
      // Predicated region
      $region45: #{pre_extraction_pallas.1} parent=5 // pred_check
        _
      $region46: #{pre_extraction_pallas.1} parent=5 // pred_check_branch
        %245 = sbr.rel (%p242) target = $region48
      $region47: #{pre_extraction_pallas.1} parent=5 // pred_region
        %s246 = ssub.s32 %s16, 1
        %s247 = smul.u32 16, %s21
        %p248 = scmp.lt.s32.totalorder %s247, 31
        %s249 = scalar_select %p248, %s247, 31
        %s250 = smul.addr %s249, 8
        %s251 = scalar_lea.vmem %s0, %s250
        %p252 = pneg %p42
        %p253 = pneg %p39
        %p254 = pneg %p63
        %p255 = pneg %p60
        %p256 = pneg %p84
        %p257 = pneg %p81
        %p258 = pneg %p105
        %p259 = pneg %p102
        %p260 = pneg %p126
        %p261 = pneg %p123
        %p262 = pneg %p147
        %p263 = pneg %p144
        %p264 = pneg %p168
        %p265 = pneg %p165
        %p266 = pneg %p194
        %p267 = pneg %p191
        %s268 = sand.u32 %s181, 1
        %s269 = scalar_lea.sflag [#allocation3], %s268
        %s270 = sand.u32 %s181, 1
        %s271 = smul.addr %s270, 8
        %s272 = scalar_lea.vmem [#allocation2], %s271
        %s273 = smul.u32 16, %s21
        %p274 = scmp.lt.s32.totalorder %s273, 31
        %s275 = scalar_select %p274, %s273, 31
        %s276 = smul.addr %s275, 8
        %s277 = scalar_lea.vmem %s0, %s276
        %s278 = smul.u32 16, %s21
        %v279 = vld [vmem:[%s277] sm:$0xff]
        %v280 = vld [vmem:[%s277 + $0x8] sm:$0xff]
        %v281 = vld [vmem:[%s277 + $0x10] sm:$0xff]
        %v282 = vld [vmem:[%s277 + $0x18] sm:$0xff]
        %v283 = vld [vmem:[%s277 + $0x20] sm:$0xff]
        %v284 = vld [vmem:[%s277 + $0x28] sm:$0xff]
        %v285 = vld [vmem:[%s277 + $0x30] sm:$0xff]
        %v286 = vld [vmem:[%s277 + $0x38] sm:$0xff]
        %v287 = vld [vmem:[%s277 + $0x40] sm:$0xff]
        %v288 = vld [vmem:[%s277 + $0x48] sm:$0xff]
        %v289 = vld [vmem:[%s277 + $0x50] sm:$0xff]
        %v290 = vld [vmem:[%s277 + $0x58] sm:$0xff]
        %v291 = vld [vmem:[%s277 + $0x60] sm:$0xff]
        %v292 = vld [vmem:[%s277 + $0x68] sm:$0xff]
        %v293 = vld [vmem:[%s277 + $0x70] sm:$0xff]
        %v294 = vld [vmem:[%s277 + $0x78] sm:$0xff]
        %v295 = vld [vmem:[%s1] sm:$0xff]
        %v296 = vld [vmem:[%s1 + $0x8] sm:$0x7]
        %v297 = vld [vmem:[%s2] sm:$0x1]
        %v299 = vlaneseq
        %v300 = vshrl.u32 %v299, 7
        %v301 = vsub.s32 0, %v300
        %v302 = vrot.slane %v297, %v301
        %vm304 = vcmask 89088
        %v306 = vsel %vm304, %v279, 0
        %v309 = vsel %vm304, %v280, 0
        %v312 = vsel %vm304, %v281, 0
        %v315 = vsel %vm304, %v282, 0
        %v318 = vsel %vm304, %v283, 0
        %v321 = vsel %vm304, %v284, 0
        %v324 = vsel %vm304, %v285, 0
        %v327 = vsel %vm304, %v286, 0
        %v330 = vsel %vm304, %v287, 0
        %v333 = vsel %vm304, %v288, 0
        %v336 = vsel %vm304, %v289, 0
        %v339 = vsel %vm304, %v290, 0
        %v342 = vsel %vm304, %v291, 0
        %v345 = vsel %vm304, %v292, 0
        %v348 = vsel %vm304, %v293, 0
        %v351 = vsel %vm304, %v294, 0
        %vm353 = vcmask 1042432
        %v355 = vsel %vm353, %v296, 0
        %357 = vmatprep.subr.mxu0 0.0
        %358 = vmatpush1.msra.mxu0 %v295
        %359 = vmatprep.subr.mxu0 0.0
        %360 = vmatpush1.msra.mxu0 %v355
        %361 = vmatprep.subr.mxu0 0.0
        %362 = vmatpush1.msra.mxu0 0.0
        %363 = vmatprep.subr.mxu0 0.0
        %364 = vmatpush1.msra.mxu0 0.0
        %365 = vmatprep.subr.mxu0 0.0
        %366 = vmatpush1.msra.mxu0 0.0
        %367 = vmatprep.subr.mxu0 0.0
        %368 = vmatpush1.msra.mxu0 0.0
        %369 = vmatprep.subr.mxu0 0.0
        %370 = vmatpush1.msra.mxu0 0.0
        %371 = vmatprep.subr.mxu0 0.0
        %372 = vmatpush1.msra.mxu0 0.0
        %373 = vmatprep.subr.mxu0 0.0
        %374 = vmatpush1.msra.mxu0 0.0
        %375 = vmatprep.subr.mxu0 0.0
        %376 = vmatpush1.msra.mxu0 0.0
        %377 = vmatprep.subr.mxu0 0.0
        %378 = vmatpush1.msra.mxu0 0.0
        %379 = vmatprep.subr.mxu0 0.0
        %380 = vmatpush1.msra.mxu0 0.0
        %381 = vmatprep.subr.mxu0 0.0
        %382 = vmatpush1.msra.mxu0 0.0
        %383 = vmatprep.subr.mxu0 0.0
        %384 = vmatpush1.msra.mxu0 0.0
        %385 = vmatprep.subr.mxu0 0.0
        %386 = vmatpush1.msra.mxu0 0.0
        %387 = vmatprep.subr.mxu0 0.0
        %388 = vmatpush1.msra.mxu0 0.0
        %389 = vmatprep.subr.mxu0 0.0
        %390 = vmatpush1.msra.mxu0 0.0
        %391 = vmatprep.subr.mxu0 0.0
        %392 = vmatpush1.msra.mxu0 0.0
        %393 = vmatprep.subr.mxu0 0.0
        %394 = vmatpush1.msra.mxu0 0.0
        %395 = vmatprep.subr.mxu0 0.0
        %396 = vmatpush1.msra.mxu0 0.0
        %397 = vmatprep.subr.mxu0 0.0
        %398 = vmatpush1.msra.mxu0 0.0
        %399 = vmatprep.subr.mxu0 0.0
        %400 = vmatpush1.msra.mxu0 0.0
        %401 = vmatprep.subr.mxu0 0.0
        %402 = vmatpush1.msra.mxu0 0.0
        %403 = vmatprep.subr.mxu0 0.0
        %404 = vmatpush1.msra.mxu0 0.0
        %405 = vmatprep.subr.mxu0 0.0
        %406 = vmatpush1.msra.mxu0 0.0
        %407 = vmatprep.subr.mxu0 0.0
        %408 = vmatpush1.msra.mxu0 0.0
        %409 = vmatprep.subr.mxu0 0.0
        %410 = vmatpush1.msra.mxu0 0.0
        %411 = vmatprep.subr.mxu0 0.0
        %412 = vmatpush1.msra.mxu0 0.0
        %413 = vmatprep.subr.mxu0 0.0
        %414 = vmatpush1.msra.mxu0 0.0
        %415 = vmatprep.subr.mxu0 0.0
        %416 = vmatpush1.msra.mxu0 0.0
        %417 = vmatprep.subr.mxu0 0.0
        %418 = vmatpush1.msra.mxu0 0.0
        %419 = vmatprep.subr.mxu0 0.0
        %420 = vmatpush1.msra.mxu0 0.0
        %421 = vmatprep.mubr.f32.mxu0 0.0
        %422 = vmatmul.mubr.f32.gmra.mrb[0].mxu0 %v306
        %v423 = vpop.f32.mrb[0].mxu0
        %v424 = vadd.f32 %v302, %v423
        %v425 = vpop.f32.mrb[0].mxu0
        %426 = vmatprep.mubr.f32.mxu0 0.0
        %427 = vmatmul.mubr.f32.gmra.mrb[0].mxu0 %v309
        %v428 = vpop.f32.mrb[0].mxu0
        %v429 = vadd.f32 %v302, %v428
        %v430 = vpop.f32.mrb[0].mxu0
        %431 = vmatprep.mubr.f32.mxu0 0.0
        %432 = vmatmul.mubr.f32.gmra.mrb[0].mxu0 %v312
        %v433 = vpop.f32.mrb[0].mxu0
        %v434 = vadd.f32 %v302, %v433
        %v435 = vpop.f32.mrb[0].mxu0
        %436 = vmatprep.mubr.f32.mxu0 0.0
        %437 = vmatmul.mubr.f32.gmra.mrb[0].mxu0 %v315
        %v438 = vpop.f32.mrb[0].mxu0
        %v439 = vadd.f32 %v302, %v438
        %v440 = vpop.f32.mrb[0].mxu0
        %441 = vmatprep.mubr.f32.mxu0 0.0
        %442 = vmatmul.mubr.f32.gmra.mrb[0].mxu0 %v318
        %v443 = vpop.f32.mrb[0].mxu0
        %v444 = vadd.f32 %v302, %v443
        %v445 = vpop.f32.mrb[0].mxu0
        %446 = vmatprep.mubr.f32.mxu0 0.0
        %447 = vmatmul.mubr.f32.gmra.mrb[0].mxu0 %v321
        %v448 = vpop.f32.mrb[0].mxu0
        %v449 = vadd.f32 %v302, %v448
        %v450 = vpop.f32.mrb[0].mxu0
        %451 = vmatprep.mubr.f32.mxu0 0.0
        %452 = vmatmul.mubr.f32.gmra.mrb[0].mxu0 %v324
        %v453 = vpop.f32.mrb[0].mxu0
        %v454 = vadd.f32 %v302, %v453
        %v455 = vpop.f32.mrb[0].mxu0
        %456 = vmatprep.mubr.f32.mxu0 0.0
        %457 = vmatmul.mubr.f32.gmra.mrb[0].mxu0 %v327
        %v458 = vpop.f32.mrb[0].mxu0
        %v459 = vadd.f32 %v302, %v458
        %v460 = vpop.f32.mrb[0].mxu0
        %461 = vmatprep.mubr.f32.mxu0 0.0
        %462 = vmatmul.mubr.f32.gmra.mrb[0].mxu0 %v330
        %v463 = vpop.f32.mrb[0].mxu0
        %v464 = vadd.f32 %v302, %v463
        %v465 = vpop.f32.mrb[0].mxu0
        %466 = vmatprep.mubr.f32.mxu0 0.0
        %467 = vmatmul.mubr.f32.gmra.mrb[0].mxu0 %v333
        %v468 = vpop.f32.mrb[0].mxu0
        %v469 = vadd.f32 %v302, %v468
        %v470 = vpop.f32.mrb[0].mxu0
        %471 = vmatprep.mubr.f32.mxu0 0.0
        %472 = vmatmul.mubr.f32.gmra.mrb[0].mxu0 %v336
        %v473 = vpop.f32.mrb[0].mxu0
        %v474 = vadd.f32 %v302, %v473
        %v475 = vpop.f32.mrb[0].mxu0
        %476 = vmatprep.mubr.f32.mxu0 0.0
        %477 = vmatmul.mubr.f32.gmra.mrb[0].mxu0 %v339
        %v478 = vpop.f32.mrb[0].mxu0
        %v479 = vadd.f32 %v302, %v478
        %v480 = vpop.f32.mrb[0].mxu0
        %481 = vmatprep.mubr.f32.mxu0 0.0
        %482 = vmatmul.mubr.f32.gmra.mrb[0].mxu0 %v342
        %v483 = vpop.f32.mrb[0].mxu0
        %v484 = vadd.f32 %v302, %v483
        %v485 = vpop.f32.mrb[0].mxu0
        %486 = vmatprep.mubr.f32.mxu0 0.0
        %487 = vmatmul.mubr.f32.gmra.mrb[0].mxu0 %v345
        %v488 = vpop.f32.mrb[0].mxu0
        %v489 = vadd.f32 %v302, %v488
        %v490 = vpop.f32.mrb[0].mxu0
        %491 = vmatprep.mubr.f32.mxu0 0.0
        %492 = vmatmul.mubr.f32.gmra.mrb[0].mxu0 %v348
        %v493 = vpop.f32.mrb[0].mxu0
        %v494 = vadd.f32 %v302, %v493
        %v495 = vpop.f32.mrb[0].mxu0
        %496 = vmatprep.mubr.f32.mxu0 0.0
        %497 = vmatmul.mubr.f32.gmra.mrb[0].mxu0 %v351
        %v498 = vpop.f32.mrb[0].mxu0
        %v499 = vadd.f32 %v302, %v498
        %v500 = vpop.f32.mrb[0].mxu0
        %501 = vdwg.mxu0
        %v502 = vmax.f32 %v424, 0.0
        %v503 = vmax.f32 %v429, 0.0
        %v504 = vmax.f32 %v434, 0.0
        %v505 = vmax.f32 %v439, 0.0
        %v506 = vmax.f32 %v444, 0.0
        %v507 = vmax.f32 %v449, 0.0
        %v508 = vmax.f32 %v454, 0.0
        %v509 = vmax.f32 %v459, 0.0
        %v510 = vmax.f32 %v464, 0.0
        %v511 = vmax.f32 %v469, 0.0
        %v512 = vmax.f32 %v474, 0.0
        %v513 = vmax.f32 %v479, 0.0
        %v514 = vmax.f32 %v484, 0.0
        %v515 = vmax.f32 %v489, 0.0
        %v516 = vmax.f32 %v494, 0.0
        %v517 = vmax.f32 %v499, 0.0
        %v518 = vld [vmem:[%s3] sm:$0xff]
        %v519 = vld [vmem:[%s3 + $0x8] sm:$0xff]
        %v520 = vld [vmem:[%s3 + $0x10] sm:$0xff]
        %v521 = vld [vmem:[%s3 + $0x18] sm:$0xff]
        %v522 = vld [vmem:[%s4] sm:$0x1]
        %v524 = vlaneseq
        %v525 = vshrl.u32 %v524, 7
        %v526 = vsub.s32 0, %v525
        %v527 = vrot.slane %v522, %v526
        %vm529 = vcmask 261120
        %v531 = vsel %vm529, %v502, 0
        %v534 = vsel %vm529, %v503, 0
        %v537 = vsel %vm529, %v504, 0
        %v540 = vsel %vm529, %v505, 0
        %v543 = vsel %vm529, %v506, 0
        %v546 = vsel %vm529, %v507, 0
        %v549 = vsel %vm529, %v508, 0
        %v552 = vsel %vm529, %v509, 0
        %v555 = vsel %vm529, %v510, 0
        %v558 = vsel %vm529, %v511, 0
        %v561 = vsel %vm529, %v512, 0
        %v564 = vsel %vm529, %v513, 0
        %v567 = vsel %vm529, %v514, 0
        %v570 = vsel %vm529, %v515, 0
        %v573 = vsel %vm529, %v516, 0
        %v576 = vsel %vm529, %v517, 0
        %578 = vmatprep.subr.mxu0 0.0
        %579 = vmatpush1.msra.mxu0 %v518
        %580 = vmatprep.subr.mxu0 0.0
        %581 = vmatpush1.msra.mxu0 %v519
        %582 = vmatprep.subr.mxu0 0.0
        %583 = vmatpush1.msra.mxu0 %v520
        %584 = vmatprep.subr.mxu0 0.0
        %585 = vmatpush1.msra.mxu0 %v521
        %586 = vmatprep.subr.mxu0 0.0
        %587 = vmatpush1.msra.mxu0 0.0
        %588 = vmatprep.subr.mxu0 0.0
        %589 = vmatpush1.msra.mxu0 0.0
        %590 = vmatprep.subr.mxu0 0.0
        %591 = vmatpush1.msra.mxu0 0.0
        %592 = vmatprep.subr.mxu0 0.0
        %593 = vmatpush1.msra.mxu0 0.0
        %594 = vmatprep.subr.mxu0 0.0
        %595 = vmatpush1.msra.mxu0 0.0
        %596 = vmatprep.subr.mxu0 0.0
        %597 = vmatpush1.msra.mxu0 0.0
        %598 = vmatprep.subr.mxu0 0.0
        %599 = vmatpush1.msra.mxu0 0.0
        %600 = vmatprep.subr.mxu0 0.0
        %601 = vmatpush1.msra.mxu0 0.0
        %602 = vmatprep.subr.mxu0 0.0
        %603 = vmatpush1.msra.mxu0 0.0
        %604 = vmatprep.subr.mxu0 0.0
        %605 = vmatpush1.msra.mxu0 0.0
        %606 = vmatprep.subr.mxu0 0.0
        %607 = vmatpush1.msra.mxu0 0.0
        %608 = vmatprep.subr.mxu0 0.0
        %609 = vmatpush1.msra.mxu0 0.0
        %610 = vmatprep.subr.mxu0 0.0
        %611 = vmatpush1.msra.mxu0 0.0
        %612 = vmatprep.subr.mxu0 0.0
        %613 = vmatpush1.msra.mxu0 0.0
        %614 = vmatprep.subr.mxu0 0.0
        %615 = vmatpush1.msra.mxu0 0.0
        %616 = vmatprep.subr.mxu0 0.0
        %617 = vmatpush1.msra.mxu0 0.0
        %618 = vmatprep.subr.mxu0 0.0
        %619 = vmatpush1.msra.mxu0 0.0
        %620 = vmatprep.subr.mxu0 0.0
        %621 = vmatpush1.msra.mxu0 0.0
        %622 = vmatprep.subr.mxu0 0.0
        %623 = vmatpush1.msra.mxu0 0.0
        %624 = vmatprep.subr.mxu0 0.0
        %625 = vmatpush1.msra.mxu0 0.0
        %626 = vmatprep.subr.mxu0 0.0
        %627 = vmatpush1.msra.mxu0 0.0
        %628 = vmatprep.subr.mxu0 0.0
        %629 = vmatpush1.msra.mxu0 0.0
        %630 = vmatprep.subr.mxu0 0.0
        %631 = vmatpush1.msra.mxu0 0.0
        %632 = vmatprep.subr.mxu0 0.0
        %633 = vmatpush1.msra.mxu0 0.0
        %634 = vmatprep.subr.mxu0 0.0
        %635 = vmatpush1.msra.mxu0 0.0
        %636 = vmatprep.subr.mxu0 0.0
        %637 = vmatpush1.msra.mxu0 0.0
        %638 = vmatprep.subr.mxu0 0.0
        %639 = vmatpush1.msra.mxu0 0.0
        %640 = vmatprep.subr.mxu0 0.0
        %641 = vmatpush1.msra.mxu0 0.0
        %642 = vmatprep.mubr.f32.mxu0 0.0
        %643 = vmatmul.mubr.f32.gmra.mrb[0].mxu0 %v531
        %v644 = vpop.f32.mrb[0].mxu0
        %v645 = vadd.f32 %v527, %v644
        %v646 = vpop.f32.mrb[0].mxu0
        %647 = vmatprep.mubr.f32.mxu0 0.0
        %648 = vmatmul.mubr.f32.gmra.mrb[0].mxu0 %v534
        %v649 = vpop.f32.mrb[0].mxu0
        %v650 = vadd.f32 %v527, %v649
        %v651 = vpop.f32.mrb[0].mxu0
        %652 = vmatprep.mubr.f32.mxu0 0.0
        %653 = vmatmul.mubr.f32.gmra.mrb[0].mxu0 %v537
        %v654 = vpop.f32.mrb[0].mxu0
        %v655 = vadd.f32 %v527, %v654
        %v656 = vpop.f32.mrb[0].mxu0
        %657 = vmatprep.mubr.f32.mxu0 0.0
        %658 = vmatmul.mubr.f32.gmra.mrb[0].mxu0 %v540
        %v659 = vpop.f32.mrb[0].mxu0
        %v660 = vadd.f32 %v527, %v659
        %v661 = vpop.f32.mrb[0].mxu0
        %662 = vmatprep.mubr.f32.mxu0 0.0
        %663 = vmatmul.mubr.f32.gmra.mrb[0].mxu0 %v543
        %v664 = vpop.f32.mrb[0].mxu0
        %v665 = vadd.f32 %v527, %v664
        %v666 = vpop.f32.mrb[0].mxu0
        %667 = vmatprep.mubr.f32.mxu0 0.0
        %668 = vmatmul.mubr.f32.gmra.mrb[0].mxu0 %v546
        %v669 = vpop.f32.mrb[0].mxu0
        %v670 = vadd.f32 %v527, %v669
        %v671 = vpop.f32.mrb[0].mxu0
        %672 = vmatprep.mubr.f32.mxu0 0.0
        %673 = vmatmul.mubr.f32.gmra.mrb[0].mxu0 %v549
        %v674 = vpop.f32.mrb[0].mxu0
        %v675 = vadd.f32 %v527, %v674
        %v676 = vpop.f32.mrb[0].mxu0
        %677 = vmatprep.mubr.f32.mxu0 0.0
        %678 = vmatmul.mubr.f32.gmra.mrb[0].mxu0 %v552
        %v679 = vpop.f32.mrb[0].mxu0
        %v680 = vadd.f32 %v527, %v679
        %v681 = vpop.f32.mrb[0].mxu0
        %682 = vmatprep.mubr.f32.mxu0 0.0
        %683 = vmatmul.mubr.f32.gmra.mrb[0].mxu0 %v555
        %v684 = vpop.f32.mrb[0].mxu0
        %v685 = vadd.f32 %v527, %v684
        %v686 = vpop.f32.mrb[0].mxu0
        %687 = vmatprep.mubr.f32.mxu0 0.0
        %688 = vmatmul.mubr.f32.gmra.mrb[0].mxu0 %v558
        %v689 = vpop.f32.mrb[0].mxu0
        %v690 = vadd.f32 %v527, %v689
        %v691 = vpop.f32.mrb[0].mxu0
        %692 = vmatprep.mubr.f32.mxu0 0.0
        %693 = vmatmul.mubr.f32.gmra.mrb[0].mxu0 %v561
        %v694 = vpop.f32.mrb[0].mxu0
        %v695 = vadd.f32 %v527, %v694
        %v696 = vpop.f32.mrb[0].mxu0
        %697 = vmatprep.mubr.f32.mxu0 0.0
        %698 = vmatmul.mubr.f32.gmra.mrb[0].mxu0 %v564
        %v699 = vpop.f32.mrb[0].mxu0
        %v700 = vadd.f32 %v527, %v699
        %v701 = vpop.f32.mrb[0].mxu0
        %702 = vmatprep.mubr.f32.mxu0 0.0
        %703 = vmatmul.mubr.f32.gmra.mrb[0].mxu0 %v567
        %v704 = vpop.f32.mrb[0].mxu0
        %v705 = vadd.f32 %v527, %v704
        %v706 = vpop.f32.mrb[0].mxu0
        %707 = vmatprep.mubr.f32.mxu0 0.0
        %708 = vmatmul.mubr.f32.gmra.mrb[0].mxu0 %v570
        %v709 = vpop.f32.mrb[0].mxu0
        %v710 = vadd.f32 %v527, %v709
        %v711 = vpop.f32.mrb[0].mxu0
        %712 = vmatprep.mubr.f32.mxu0 0.0
        %713 = vmatmul.mubr.f32.gmra.mrb[0].mxu0 %v573
        %v714 = vpop.f32.mrb[0].mxu0
        %v715 = vadd.f32 %v527, %v714
        %v716 = vpop.f32.mrb[0].mxu0
        %717 = vmatprep.mubr.f32.mxu0 0.0
        %718 = vmatmul.mubr.f32.gmra.mrb[0].mxu0 %v576
        %v719 = vpop.f32.mrb[0].mxu0
        %v720 = vadd.f32 %v527, %v719
        %v721 = vpop.f32.mrb[0].mxu0
        %722 = vdwg.mxu0
        %v723 = vmax.f32 %v645, 0.0
        %v724 = vmax.f32 %v650, 0.0
        %v725 = vmax.f32 %v655, 0.0
        %v726 = vmax.f32 %v660, 0.0
        %v727 = vmax.f32 %v665, 0.0
        %v728 = vmax.f32 %v670, 0.0
        %v729 = vmax.f32 %v675, 0.0
        %v730 = vmax.f32 %v680, 0.0
        %v731 = vmax.f32 %v685, 0.0
        %v732 = vmax.f32 %v690, 0.0
        %v733 = vmax.f32 %v695, 0.0
        %v734 = vmax.f32 %v700, 0.0
        %v735 = vmax.f32 %v705, 0.0
        %v736 = vmax.f32 %v710, 0.0
        %v737 = vmax.f32 %v715, 0.0
        %v738 = vmax.f32 %v720, 0.0
        %v739 = vld [vmem:[%s5] sm:$0xff]
        %v740 = vld [vmem:[%s5 + $0x8] sm:$0xff]
        %v741 = vld [vmem:[%s5 + $0x10] sm:$0xff]
        %v742 = vld [vmem:[%s5 + $0x18] sm:$0xff]
        %v743 = vld [vmem:[%s6] sm:$0x1]
        %v745 = vlaneseq
        %v746 = vshrl.u32 %v745, 7
        %v747 = vsub.s32 0, %v746
        %v748 = vrot.slane %v743, %v747
        %v751 = vsel %vm529, %v723, 0
        %v754 = vsel %vm529, %v724, 0
        %v757 = vsel %vm529, %v725, 0
        %v760 = vsel %vm529, %v726, 0
        %v763 = vsel %vm529, %v727, 0
        %v766 = vsel %vm529, %v728, 0
        %v769 = vsel %vm529, %v729, 0
        %v772 = vsel %vm529, %v730, 0
        %v775 = vsel %vm529, %v731, 0
        %v778 = vsel %vm529, %v732, 0
        %v781 = vsel %vm529, %v733, 0
        %v784 = vsel %vm529, %v734, 0
        %v787 = vsel %vm529, %v735, 0
        %v790 = vsel %vm529, %v736, 0
        %v793 = vsel %vm529, %v737, 0
        %v796 = vsel %vm529, %v738, 0
        %798 = vmatprep.subr.mxu0 0.0
        %799 = vmatpush1.msra.mxu0 %v739
        %800 = vmatprep.subr.mxu0 0.0
        %801 = vmatpush1.msra.mxu0 %v740
        %802 = vmatprep.subr.mxu0 0.0
        %803 = vmatpush1.msra.mxu0 %v741
        %804 = vmatprep.subr.mxu0 0.0
        %805 = vmatpush1.msra.mxu0 %v742
        %806 = vmatprep.subr.mxu0 0.0
        %807 = vmatpush1.msra.mxu0 0.0
        %808 = vmatprep.subr.mxu0 0.0
        %809 = vmatpush1.msra.mxu0 0.0
        %810 = vmatprep.subr.mxu0 0.0
        %811 = vmatpush1.msra.mxu0 0.0
        %812 = vmatprep.subr.mxu0 0.0
        %813 = vmatpush1.msra.mxu0 0.0
        %814 = vmatprep.subr.mxu0 0.0
        %815 = vmatpush1.msra.mxu0 0.0
        %816 = vmatprep.subr.mxu0 0.0
        %817 = vmatpush1.msra.mxu0 0.0
        %818 = vmatprep.subr.mxu0 0.0
        %819 = vmatpush1.msra.mxu0 0.0
        %820 = vmatprep.subr.mxu0 0.0
        %821 = vmatpush1.msra.mxu0 0.0
        %822 = vmatprep.subr.mxu0 0.0
        %823 = vmatpush1.msra.mxu0 0.0
        %824 = vmatprep.subr.mxu0 0.0
        %825 = vmatpush1.msra.mxu0 0.0
        %826 = vmatprep.subr.mxu0 0.0
        %827 = vmatpush1.msra.mxu0 0.0
        %828 = vmatprep.subr.mxu0 0.0
        %829 = vmatpush1.msra.mxu0 0.0
        %830 = vmatprep.subr.mxu0 0.0
        %831 = vmatpush1.msra.mxu0 0.0
        %832 = vmatprep.subr.mxu0 0.0
        %833 = vmatpush1.msra.mxu0 0.0
        %834 = vmatprep.subr.mxu0 0.0
        %835 = vmatpush1.msra.mxu0 0.0
        %836 = vmatprep.subr.mxu0 0.0
        %837 = vmatpush1.msra.mxu0 0.0
        %838 = vmatprep.subr.mxu0 0.0
        %839 = vmatpush1.msra.mxu0 0.0
        %840 = vmatprep.subr.mxu0 0.0
        %841 = vmatpush1.msra.mxu0 0.0
        %842 = vmatprep.subr.mxu0 0.0
        %843 = vmatpush1.msra.mxu0 0.0
        %844 = vmatprep.subr.mxu0 0.0
        %845 = vmatpush1.msra.mxu0 0.0
        %846 = vmatprep.subr.mxu0 0.0
        %847 = vmatpush1.msra.mxu0 0.0
        %848 = vmatprep.subr.mxu0 0.0
        %849 = vmatpush1.msra.mxu0 0.0
        %850 = vmatprep.subr.mxu0 0.0
        %851 = vmatpush1.msra.mxu0 0.0
        %852 = vmatprep.subr.mxu0 0.0
        %853 = vmatpush1.msra.mxu0 0.0
        %854 = vmatprep.subr.mxu0 0.0
        %855 = vmatpush1.msra.mxu0 0.0
        %856 = vmatprep.subr.mxu0 0.0
        %857 = vmatpush1.msra.mxu0 0.0
        %858 = vmatprep.subr.mxu0 0.0
        %859 = vmatpush1.msra.mxu0 0.0
        %860 = vmatprep.subr.mxu0 0.0
        %861 = vmatpush1.msra.mxu0 0.0
        %862 = vmatprep.mubr.f32.mxu0 0.0
        %863 = vmatmul.mubr.f32.gmra.mrb[0].mxu0 %v751
        %v864 = vpop.f32.mrb[0].mxu0
        %v865 = vadd.f32 %v748, %v864
        %v866 = vpop.f32.mrb[0].mxu0
        %867 = vmatprep.mubr.f32.mxu0 0.0
        %868 = vmatmul.mubr.f32.gmra.mrb[0].mxu0 %v754
        %v869 = vpop.f32.mrb[0].mxu0
        %v870 = vadd.f32 %v748, %v869
        %v871 = vpop.f32.mrb[0].mxu0
        %872 = vmatprep.mubr.f32.mxu0 0.0
        %873 = vmatmul.mubr.f32.gmra.mrb[0].mxu0 %v757
        %v874 = vpop.f32.mrb[0].mxu0
        %v875 = vadd.f32 %v748, %v874
        %v876 = vpop.f32.mrb[0].mxu0
        %877 = vmatprep.mubr.f32.mxu0 0.0
        %878 = vmatmul.mubr.f32.gmra.mrb[0].mxu0 %v760
        %v879 = vpop.f32.mrb[0].mxu0
        %v880 = vadd.f32 %v748, %v879
        %v881 = vpop.f32.mrb[0].mxu0
        %882 = vmatprep.mubr.f32.mxu0 0.0
        %883 = vmatmul.mubr.f32.gmra.mrb[0].mxu0 %v763
        %v884 = vpop.f32.mrb[0].mxu0
        %v885 = vadd.f32 %v748, %v884
        %v886 = vpop.f32.mrb[0].mxu0
        %887 = vmatprep.mubr.f32.mxu0 0.0
        %888 = vmatmul.mubr.f32.gmra.mrb[0].mxu0 %v766
        %v889 = vpop.f32.mrb[0].mxu0
        %v890 = vadd.f32 %v748, %v889
        %v891 = vpop.f32.mrb[0].mxu0
        %892 = vmatprep.mubr.f32.mxu0 0.0
        %893 = vmatmul.mubr.f32.gmra.mrb[0].mxu0 %v769
        %v894 = vpop.f32.mrb[0].mxu0
        %v895 = vadd.f32 %v748, %v894
        %v896 = vpop.f32.mrb[0].mxu0
        %897 = vmatprep.mubr.f32.mxu0 0.0
        %898 = vmatmul.mubr.f32.gmra.mrb[0].mxu0 %v772
        %v899 = vpop.f32.mrb[0].mxu0
        %v900 = vadd.f32 %v748, %v899
        %v901 = vpop.f32.mrb[0].mxu0
        %902 = vmatprep.mubr.f32.mxu0 0.0
        %903 = vmatmul.mubr.f32.gmra.mrb[0].mxu0 %v775
        %v904 = vpop.f32.mrb[0].mxu0
        %v905 = vadd.f32 %v748, %v904
        %v906 = vpop.f32.mrb[0].mxu0
        %907 = vmatprep.mubr.f32.mxu0 0.0
        %908 = vmatmul.mubr.f32.gmra.mrb[0].mxu0 %v778
        %v909 = vpop.f32.mrb[0].mxu0
        %v910 = vadd.f32 %v748, %v909
        %v911 = vpop.f32.mrb[0].mxu0
        %912 = vmatprep.mubr.f32.mxu0 0.0
        %913 = vmatmul.mubr.f32.gmra.mrb[0].mxu0 %v781
        %v914 = vpop.f32.mrb[0].mxu0
        %v915 = vadd.f32 %v748, %v914
        %v916 = vpop.f32.mrb[0].mxu0
        %917 = vmatprep.mubr.f32.mxu0 0.0
        %918 = vmatmul.mubr.f32.gmra.mrb[0].mxu0 %v784
        %v919 = vpop.f32.mrb[0].mxu0
        %v920 = vadd.f32 %v748, %v919
        %v921 = vpop.f32.mrb[0].mxu0
        %922 = vmatprep.mubr.f32.mxu0 0.0
        %923 = vmatmul.mubr.f32.gmra.mrb[0].mxu0 %v787
        %v924 = vpop.f32.mrb[0].mxu0
        %v925 = vadd.f32 %v748, %v924
        %v926 = vpop.f32.mrb[0].mxu0
        %927 = vmatprep.mubr.f32.mxu0 0.0
        %928 = vmatmul.mubr.f32.gmra.mrb[0].mxu0 %v790
        %v929 = vpop.f32.mrb[0].mxu0
        %v930 = vadd.f32 %v748, %v929
        %v931 = vpop.f32.mrb[0].mxu0
        %932 = vmatprep.mubr.f32.mxu0 0.0
        %933 = vmatmul.mubr.f32.gmra.mrb[0].mxu0 %v793
        %v934 = vpop.f32.mrb[0].mxu0
        %v935 = vadd.f32 %v748, %v934
        %v936 = vpop.f32.mrb[0].mxu0
        %937 = vmatprep.mubr.f32.mxu0 0.0
        %938 = vmatmul.mubr.f32.gmra.mrb[0].mxu0 %v796
        %v939 = vpop.f32.mrb[0].mxu0
        %v940 = vadd.f32 %v748, %v939
        %v941 = vpop.f32.mrb[0].mxu0
        %942 = vdwg.mxu0
        %v943 = vadd.f32 %v865, %v502
        %v944 = vadd.f32 %v870, %v503
        %v945 = vadd.f32 %v875, %v504
        %v946 = vadd.f32 %v880, %v505
        %v947 = vadd.f32 %v885, %v506
        %v948 = vadd.f32 %v890, %v507
        %v949 = vadd.f32 %v895, %v508
        %v950 = vadd.f32 %v900, %v509
        %v951 = vadd.f32 %v905, %v510
        %v952 = vadd.f32 %v910, %v511
        %v953 = vadd.f32 %v915, %v512
        %v954 = vadd.f32 %v920, %v513
        %v955 = vadd.f32 %v925, %v514
        %v956 = vadd.f32 %v930, %v515
        %v957 = vadd.f32 %v935, %v516
        %v958 = vadd.f32 %v940, %v517
        %v959 = vmax.f32 %v943, 0.0
        %v960 = vmax.f32 %v944, 0.0
        %v961 = vmax.f32 %v945, 0.0
        %v962 = vmax.f32 %v946, 0.0
        %v963 = vmax.f32 %v947, 0.0
        %v964 = vmax.f32 %v948, 0.0
        %v965 = vmax.f32 %v949, 0.0
        %v966 = vmax.f32 %v950, 0.0
        %v967 = vmax.f32 %v951, 0.0
        %v968 = vmax.f32 %v952, 0.0
        %v969 = vmax.f32 %v953, 0.0
        %v970 = vmax.f32 %v954, 0.0
        %v971 = vmax.f32 %v955, 0.0
        %v972 = vmax.f32 %v956, 0.0
        %v973 = vmax.f32 %v957, 0.0
        %v974 = vmax.f32 %v958, 0.0
        %v975 = vsel %vm529, %v959, -inf
        %v976 = vsel %vm529, %v960, -inf
        %v977 = vmax.f32 %v975, %v976
        %v978 = vrot.slane %v977, 4
        %v979 = vmax.f32 %v977, %v978
        %v980 = vrot.slane %v979, 2
        %v981 = vmax.f32 %v979, %v980
        %v982 = vrot.slane %v981, 1
        %v983 = vmax.f32 %v981, %v982
        %v984 = vsel %vm529, %v961, -inf
        %v985 = vsel %vm529, %v962, -inf
        %v986 = vmax.f32 %v984, %v985
        %v987 = vrot.slane %v986, 4
        %v988 = vmax.f32 %v986, %v987
        %v989 = vrot.slane %v988, 2
        %v990 = vmax.f32 %v988, %v989
        %v991 = vrot.slane %v990, 1
        %v992 = vmax.f32 %v990, %v991
        %v993 = vsel %vm529, %v963, -inf
        %v994 = vsel %vm529, %v964, -inf
        %v995 = vmax.f32 %v993, %v994
        %v996 = vrot.slane %v995, 4
        %v997 = vmax.f32 %v995, %v996
        %v998 = vrot.slane %v997, 2
        %v999 = vmax.f32 %v997, %v998
        %v1000 = vrot.slane %v999, 1
        %v1001 = vmax.f32 %v999, %v1000
        %v1002 = vsel %vm529, %v965, -inf
        %v1003 = vsel %vm529, %v966, -inf
        %v1004 = vmax.f32 %v1002, %v1003
        %v1005 = vrot.slane %v1004, 4
        %v1006 = vmax.f32 %v1004, %v1005
        %v1007 = vrot.slane %v1006, 2
        %v1008 = vmax.f32 %v1006, %v1007
        %v1009 = vrot.slane %v1008, 1
        %v1010 = vmax.f32 %v1008, %v1009
        %v1011 = vsel %vm529, %v967, -inf
        %v1012 = vsel %vm529, %v968, -inf
        %v1013 = vmax.f32 %v1011, %v1012
        %v1014 = vrot.slane %v1013, 4
        %v1015 = vmax.f32 %v1013, %v1014
        %v1016 = vrot.slane %v1015, 2
        %v1017 = vmax.f32 %v1015, %v1016
        %v1018 = vrot.slane %v1017, 1
        %v1019 = vmax.f32 %v1017, %v1018
        %v1020 = vsel %vm529, %v969, -inf
        %v1021 = vsel %vm529, %v970, -inf
        %v1022 = vmax.f32 %v1020, %v1021
        %v1023 = vrot.slane %v1022, 4
        %v1024 = vmax.f32 %v1022, %v1023
        %v1025 = vrot.slane %v1024, 2
        %v1026 = vmax.f32 %v1024, %v1025
        %v1027 = vrot.slane %v1026, 1
        %v1028 = vmax.f32 %v1026, %v1027
        %v1029 = vsel %vm529, %v971, -inf
        %v1030 = vsel %vm529, %v972, -inf
        %v1031 = vmax.f32 %v1029, %v1030
        %v1032 = vrot.slane %v1031, 4
        %v1033 = vmax.f32 %v1031, %v1032
        %v1034 = vrot.slane %v1033, 2
        %v1035 = vmax.f32 %v1033, %v1034
        %v1036 = vrot.slane %v1035, 1
        %v1037 = vmax.f32 %v1035, %v1036
        %v1038 = vsel %vm529, %v973, -inf
        %v1039 = vsel %vm529, %v974, -inf
        %v1040 = vmax.f32 %v1038, %v1039
        %v1041 = vrot.slane %v1040, 4
        %v1042 = vmax.f32 %v1040, %v1041
        %v1043 = vrot.slane %v1042, 2
        %v1044 = vmax.f32 %v1042, %v1043
        %v1045 = vrot.slane %v1044, 1
        %v1046 = vmax.f32 %v1044, %v1045
        %vm1055 = vcmask 1041409
        %v1056 = vsel %vm1055, %v992, %v983
        %vm1057 = vcmask 1042434
        %v1058 = vsel %vm1057, %v1001, %v1056
        %vm1059 = vcmask 1043459
        %v1060 = vsel %vm1059, %v1010, %v1058
        %vm1061 = vcmask 1044484
        %v1062 = vsel %vm1061, %v1019, %v1060
        %vm1063 = vcmask 1045509
        %v1064 = vsel %vm1063, %v1028, %v1062
        %vm1065 = vcmask 1046534
        %v1066 = vsel %vm1065, %v1037, %v1064
        %vm1067 = vcmask 1047559
        %v1068 = vsel %vm1067, %v1046, %v1066
        %1070 = vst.msk [vmem:[%s272] sm:$0xff] %vm529, %v1068
        %s1071 = sand.u32 %s181, 1
        %s1072 = scalar_lea.sflag [#allocation3], %s1071
        %s1073 = sand.u32 %s181, 1
        %s1074 = smul.addr %s1073, 8
        %s1075 = scalar_lea.vmem [#allocation2], %s1074
        // Predicated region
        $region49: #{pre_extraction_pallas.1} parent=47 // pred_check
          %p1076 = pneg %p191
        $region50: #{pre_extraction_pallas.1} parent=47 // pred_check_branch
          %1078 = sbr.rel (%p1076) target = $region52
        $region51: #{pre_extraction_pallas.1} parent=47 // pred_region
          %s1080 = ssub.s32 128, 128
          %1081 = vsyncadd %s1072, %s1080
          %s1082 = smul.addr %s21, 128
          %s1083 = scalar_lea.hbm %s7, %s1082
          %s1085 = sshll.u32 %s1075, 4
          %s1086 = int_to_ptr.vmem [resolvable:$true] %s1085
          %1088 = dma.vmem_to_hbm [thread:$0]  %s1086, 128, %s1083, %s1072
        $region52: #{pre_extraction_pallas.1} parent=47 // pred_fallthru
          _
      $region48: #{pre_extraction_pallas.1} parent=5 // pred_fallthru
        _
      %p1089 = scmp.le.s32.totalorder 2, %s16
      // Predicated region
      $region53: #{pre_extraction_pallas.1} parent=5 // pred_check
        %p1090 = pneg %p1089
      $region54: #{pre_extraction_pallas.1} parent=5 // pred_check_branch
        %1092 = sbr.rel (%p1090) target = $region56
      $region55: #{pre_extraction_pallas.1} parent=5 // pred_region
        %s1093 = ssub.s32 %s16, 2
        // Predicated region
        $region57: #{pre_extraction_pallas.1} parent=55 // pred_check
          %p1094 = pneg %p197
        $region58: #{pre_extraction_pallas.1} parent=55 // pred_check_branch
          %1096 = sbr.rel (%p1094) target = $region60
        $region59: #{pre_extraction_pallas.1} parent=55 // pred_region
          %s1097 = sand.u32 %s182, 1
          %s1098 = scalar_lea.sflag [#allocation3], %s1097
          %s1099 = sand.u32 %s182, 1
          %s1100 = smul.addr %s1099, 8
          %s1101 = scalar_lea.vmem [#allocation2], %s1100
          %1102 = dma.done %s1098, 128
        $region60: #{pre_extraction_pallas.1} parent=55 // pred_fallthru
          _
      $region56: #{pre_extraction_pallas.1} parent=5 // pred_fallthru
        _
    $region6: #{pre_extraction_pallas.1} parent=1 // loop_footer
      %s20 = sadd.s32 1, %s16
    $region7: #{pre_extraction_pallas.1} parent=1 // loop_footer_branch
      %15 = sbr.rel target = $region3
    $region8: #{pre_extraction_pallas.1} parent=1 // loop_exit
      _
    %1103 = vsyncpa [#allocation3], 1
    %s1104 = scalar_lea.sflag [#allocation3], 1
    %1105 = vsyncpa %s1104, 1

</llo_original>
